<compile_context>
chip_gen: v5e
topology: v5e:2x2
jax: 0.10.0
libtpu: 0.0.40
codegen_flags: <defaults>
</compile_context>

<pallas_src>
import jax
import jax.numpy as jnp
from jax.experimental import pallas as pl
from jax.experimental.pallas import tpu as pltpu

_EPSILON = 1e-07


def _round_up(x, m):
    return (x + m - 1) // m * m


def _regression_kernel(x_ref, w_ref, b_ref, out_ref):
    # x_ref:   (TILE_B, D)    bf16 flattened input tile (pipelined over the batch)
    # w_ref:   (D, K_pad)     bf16 folded classifier weight  W' (resident)
    # b_ref:   (1, K_pad)     f32  folded classifier bias    b' (resident)
    # out_ref: (TILE_B, K_pad) bf16 logits tile (lane-dense: K_pad multiple of 128)
    acc = jnp.dot(x_ref[...], w_ref[...], preferred_element_type=jnp.float32)
    out_ref[...] = (acc + b_ref[...]).astype(out_ref.dtype)


def _vmem_budget():
    """Return (per-step tile budget, physical VMEM) in bytes, generation-aware."""
    try:
        phys = int(pltpu.get_tpu_info().vmem_capacity_bytes)
    except Exception:
        phys = 64 << 20  # conservative fallback: v7x per-TC VMEM
    return max(8 << 20, min(phys // 4, 24 << 20)), phys


def _pick_tile_b(B, bytes_per_row, budget_bytes):
    """Pick the batch tile.

    Rules: tile must be a multiple of 8 OR equal the full batch (Pallas (8,128)
    block constraint); prefer a tile that divides B exactly (no padded HBM copy
    of x); keep the double-buffered x/out tiles inside `budget_bytes`; give the
    grid >= 2 steps when the batch allows it so v7x can use both TensorCores.
    """
    cap = max(8, (budget_bytes // max(bytes_per_row, 1)) // 8 * 8)
    if B <= 8:
        return B                       # single full-batch tile, no padding
    if B % 8 != 0:
        if B <= cap:
            return B                   # full-batch block is legal & fits budget
        return cap                     # rare ragged + huge batch: padded tiles
    # B is a multiple of 8 and > 8: aim for >= 2 grid steps within the budget.
    target = min(cap, max(8, (B // 2) // 8 * 8))
    best = 8
    d = 8
    while d <= target:                 # largest multiple-of-8 divisor of B <= target
        if B % d == 0:
            best = d
        d += 8
    if best * 2 >= target:             # exact divisor close enough to target: no pad
        return best
    return target                      # otherwise accept a small batch pad


def regression_model_forward(x_nchw, mask_tanh, pattern_tanh, clf_w, clf_b,
                             norm_mean, norm_std, *, compute_dtype=jnp.bfloat16):
    """x_nchw: (B, C, H, W).  mask_tanh: (1,1,H,W).  pattern_tanh: (1,C,H,W).
    clf_w: (C*H*W, K).  clf_b: (K,).  norm_mean/norm_std: (C,)."""
    B, C, H, W = x_nchw.shape
    D = C * H * W
    K = clf_w.shape[1]

    # ---- fold tanh / Normalize / blend into the classifier constants (tiny, once) --
    # (1-m)*x + m*p  ->  logits = x_flat @ (omm[:,None]*W) + (m*p).flat @ W + b
    mask = jnp.tanh(mask_tanh) / (2.0 + _EPSILON) + 0.5
    pattern = jnp.tanh(pattern_tanh) / (2.0 + _EPSILON) + 0.5
    pattern = (pattern - norm_mean[None, :, None, None]) / norm_std[None, :, None, None]
    omm = jnp.broadcast_to(1.0 - mask, (1, C, H, W)).reshape(D).astype(jnp.float32)
    mp = jnp.broadcast_to(mask * pattern, (1, C, H, W)).reshape(D).astype(jnp.float32)
    w_folded = omm[:, None] * clf_w.astype(jnp.float32)                    # (D, K)
    b_folded = mp @ clf_w.astype(jnp.float32) + clf_b.astype(jnp.float32)  # (K,)

    # ---- tiling: never pad D (it is not tiled); pad only tiny K and, if truly
    #      unavoidable, the batch ----
    K_pad = _round_up(max(K, 1), 128)              # lane-dense output columns
    x_isz = jnp.dtype(compute_dtype).itemsize
    out_isz = jnp.dtype(compute_dtype).itemsize

    tile_budget, vmem_phys = _vmem_budget()
    w_bytes = D * K_pad * x_isz
    b_bytes = K_pad * 4
    row_bytes = 2 * D * x_isz + 2 * K_pad * out_isz          # double-buffered x + out
    TILE_B = _pick_tile_b(B, row_bytes, max(tile_budget - w_bytes - b_bytes, 1 << 20))
    B_pad = _round_up(B, TILE_B)
    grid = (B_pad // TILE_B,)

    x_p = x_nchw.reshape(B, D).astype(compute_dtype)          # bf16 cast before the call
    if B_pad != B:
        # Only hit when B has no clean multiple-of-8 tiling.
        x_p = jnp.pad(x_p, ((0, B_pad - B), (0, 0)))
    w_p = jnp.pad(w_folded, ((0, 0), (0, K_pad - K))).astype(compute_dtype)
    b_p = jnp.pad(b_folded.reshape(1, K), ((0, 0), (0, K_pad - K))).astype(jnp.float32)

    # VMEM footprint (counting resident W'/b' at worst-case 2 buffers) + headroom.
    footprint = (2 * TILE_B * D * x_isz + 2 * TILE_B * K_pad * out_isz
                 + 2 * w_bytes + 2 * b_bytes)
    vmem_limit = int(min(max(16 << 20, int(footprint * 1.5) + (4 << 20)),
                         (vmem_phys * 3) // 4))

    cost = pl.CostEstimate(
        flops=2 * B_pad * D * K_pad,
        transcendentals=0,
        bytes_accessed=(B_pad * D * x_isz            # x (bf16, unpadded in common case)
                        + D * K_pad * x_isz          # folded weight
                        + K_pad * 4                  # bias
                        + B_pad * K_pad * out_isz),  # bf16 logits writeback
    )

    def _call(single_buffer_resident):
        res_kw = ({"pipeline_mode": pl.Buffered(1)} if single_buffer_resident else {})
        return pl.pallas_call(
            _regression_kernel,
            out_shape=jax.ShapeDtypeStruct((B_pad, K_pad), compute_dtype),
            grid=grid,
            in_specs=[
                pl.BlockSpec((TILE_B, D), lambda i: (i, 0)),            # x: pipelined
                pl.BlockSpec((D, K_pad), lambda i: (0, 0), **res_kw),   # W': resident
                pl.BlockSpec((1, K_pad), lambda i: (0, 0), **res_kw),   # b': resident
            ],
            out_specs=pl.BlockSpec((TILE_B, K_pad), lambda i: (i, 0)),
            compiler_params=pltpu.CompilerParams(
                dimension_semantics=("parallel",),
                vmem_limit_bytes=vmem_limit,
            ),
            cost_estimate=cost,
        )(x_p, w_p, b_p)

    try:
        out = _call(single_buffer_resident=True)
    except Exception:
        # Older jax without BlockSpec.pipeline_mode / Buffered(1): default buffering.
        out = _call(single_buffer_resident=False)

    return out[:B, :K].astype(jnp.float32)


def _reference_forward(x_nchw, mask_tanh, pattern_tanh, clf_w, clf_b,
                       norm_mean, norm_std):
    mask = jnp.tanh(mask_tanh) / (2.0 + _EPSILON) + 0.5
    pattern = jnp.tanh(pattern_tanh) / (2.0 + _EPSILON) + 0.5
    pattern = (pattern - norm_mean[None, :, None, None]) / norm_std[None, :, None, None]
    blended = (1.0 - mask) * x_nchw + mask * pattern
    B = x_nchw.shape[0]
    return blended.reshape(B, -1) @ clf_w + clf_b[None, :]


if __name__ == "__main__":
    # Small shapes consistent with a cifar10-style task.
    B, C, H, W = 2, 3, 16, 16
    D = C * H * W
    K = 10  # num classes

    key = jax.random.PRNGKey(0)
    k_x, k_mask, k_pat, k_w, k_b = jax.random.split(key, 5)

    x = jax.random.normal(k_x, (B, C, H, W), dtype=jnp.float32)
    init_mask = jax.random.normal(k_mask, (1, 1, H, W), dtype=jnp.float32)
    init_pattern = jax.random.normal(k_pat, (1, C, H, W), dtype=jnp.float32)

    # Synthetic deterministic classifier (flatten + Linear); frozen / eval-mode
    # in the original module, so plain constant weights here.
    clf_w = 0.02 * jax.random.normal(k_w, (D, K), dtype=jnp.float32)
    clf_b = 0.1 * jax.random.normal(k_b, (K,), dtype=jnp.float32)

    # cifar10 Normalize constants
    norm_mean = jnp.array([0.4914, 0.4822, 0.4465], dtype=jnp.float32)
    norm_std = jnp.array([0.247, 0.243, 0.261], dtype=jnp.float32)

    out = regression_model_forward(x, init_mask, init_pattern, clf_w, clf_b,
                                   norm_mean, norm_std)
    out = jax.block_until_ready(out)

    ref = _reference_forward(x, init_mask, init_pattern, clf_w, clf_b,
                             norm_mean, norm_std)
    assert out.shape == (B, K)
    # Tolerance sized for the bf16 x / W' / logits path (f32 MXU accumulation):
    # observed error is ~1e-3; 3e-2 leaves ample margin while still catching bugs.
    assert jnp.allclose(out, ref, atol=3e-2, rtol=3e-2), "mismatch vs reference"

    print("KERNEL_OK")
</pallas_src>

<mosaic_0001>
module attributes {stable_mosaic.version = 11 : i64} {
  func.func @_regression_kernel(%arg0: i32, %arg1: memref<2x768xbf16, #tpu.memory_space<vmem>>, %arg2: memref<768x128xbf16, #tpu.memory_space<vmem>>, %arg3: memref<1x128xf32, #tpu.memory_space<vmem>>, %arg4: memref<2x128xbf16, #tpu.memory_space<vmem>>) attributes {dimension_semantics = [#tpu.dimension_semantics<parallel>], iteration_bounds = array<i64: 1>, scalar_prefetch = 0 : i64, scratch_operands = 0 : i64, tpu.core_type = #tpu.core_type<tc>, window_params = [{transform_indices = @transform_0, window_bounds = array<i64: 2, 768>}, {pipeline_mode = #tpu.pipeline_mode<synchronous>, transform_indices = @transform_1, window_bounds = array<i64: 768, 128>}, {pipeline_mode = #tpu.pipeline_mode<synchronous>, transform_indices = @transform_2, window_bounds = array<i64: 1, 128>}, {transform_indices = @transform_3, window_bounds = array<i64: 2, 128>}]} {
    %c0 = arith.constant 0 : index
    %c0_0 = arith.constant 0 : index
    %0 = vector.load %arg1[%c0, %c0_0] : memref<2x768xbf16, #tpu.memory_space<vmem>>, vector<2x768xbf16>
    %c0_1 = arith.constant 0 : index
    %c0_2 = arith.constant 0 : index
    %1 = vector.load %arg2[%c0_1, %c0_2] : memref<768x128xbf16, #tpu.memory_space<vmem>>, vector<768x128xbf16>
    %cst = arith.constant dense<0.000000e+00> : vector<2x128xf32>
    %2 = tpu.matmul %0, %1, %cst {dimension_numbers = #tpu.dot_dimension_numbers<[1], [0], [0], [1], [0, 0, 1, 1], [], []>} : vector<2x768xbf16>, vector<768x128xbf16>, vector<2x128xf32> -> vector<2x128xf32>
    %c0_3 = arith.constant 0 : index
    %c0_4 = arith.constant 0 : index
    %3 = vector.load %arg3[%c0_3, %c0_4] : memref<1x128xf32, #tpu.memory_space<vmem>>, vector<1x128xf32>
    %4 = vector.broadcast %3 : vector<1x128xf32> to vector<2x128xf32>
    %5 = arith.addf %2, %4 : vector<2x128xf32>
    %6 = arith.truncf %5 : vector<2x128xf32> to vector<2x128xbf16>
    %c0_5 = arith.constant 0 : index
    %c0_6 = arith.constant 0 : index
    %7 = vector.load %arg4[%c0_5, %c0_6] : memref<2x128xbf16, #tpu.memory_space<vmem>>, vector<2x128xbf16>
    tpu.vector_store %arg4[%c0_5, %c0_6], %6 {strides = array<i32>} : memref<2x128xbf16, #tpu.memory_space<vmem>>, vector<2x128xbf16>,
    return
  }
  func.func @transform_0(%arg0: i32) -> (i32, i32) {
    %c0_i32 = arith.constant 0 : i32
    %c0_i32_0 = arith.constant 0 : i32
    return %arg0, %c0_i32 : i32, i32
  }
  func.func @transform_1(%arg0: i32) -> (i32, i32) {
    %c0_i32 = arith.constant 0 : i32
    %c0_i32_0 = arith.constant 0 : i32
    %c0_i32_1 = arith.constant 0 : i32
    return %c0_i32, %c0_i32_0 : i32, i32
  }
  func.func @transform_2(%arg0: i32) -> (i32, i32) {
    %c0_i32 = arith.constant 0 : i32
    %c0_i32_0 = arith.constant 0 : i32
    %c0_i32_1 = arith.constant 0 : i32
    return %c0_i32, %c0_i32_0 : i32, i32
  }
  func.func @transform_3(%arg0: i32) -> (i32, i32) {
    %c0_i32 = arith.constant 0 : i32
    %c0_i32_0 = arith.constant 0 : i32
    return %arg0, %c0_i32 : i32, i32
  }
}

module attributes {stable_mosaic.version = 11 : i64} {
  func.func @_regression_kernel(%arg0: i32, %arg1: memref<2x768xbf16, #tpu.memory_space<vmem>>, %arg2: memref<768x128xbf16, #tpu.memory_space<vmem>>, %arg3: memref<1x128xf32, #tpu.memory_space<vmem>>, %arg4: memref<2x128xbf16, #tpu.memory_space<vmem>>) attributes {dimension_semantics = [#tpu.dimension_semantics<parallel>], iteration_bounds = array<i64: 1>, scalar_prefetch = 0 : i64, scratch_operands = 0 : i64, tpu.core_type = #tpu.core_type<tc>, window_params = [{transform_indices = @transform_0, window_bounds = array<i64: 2, 768>}, {pipeline_mode = #tpu.pipeline_mode<synchronous>, transform_indices = @transform_1, window_bounds = array<i64: 768, 128>}, {pipeline_mode = #tpu.pipeline_mode<synchronous>, transform_indices = @transform_2, window_bounds = array<i64: 1, 128>}, {transform_indices = @transform_3, window_bounds = array<i64: 2, 128>}]} {
    %c0 = arith.constant 0 : index
    %c0_0 = arith.constant 0 : index
    %0 = vector.load %arg1[%c0, %c0_0] : memref<2x768xbf16, #tpu.memory_space<vmem>>, vector<2x768xbf16>
    %c0_1 = arith.constant 0 : index
    %c0_2 = arith.constant 0 : index
    %1 = vector.load %arg2[%c0_1, %c0_2] : memref<768x128xbf16, #tpu.memory_space<vmem>>, vector<768x128xbf16>
    %cst = arith.constant dense<0.000000e+00> : vector<2x128xf32>
    %2 = tpu.matmul %0, %1, %cst {dimension_numbers = #tpu.dot_dimension_numbers<[1], [0], [0], [1], [0, 0, 1, 1], [], []>} : vector<2x768xbf16>, vector<768x128xbf16>, vector<2x128xf32> -> vector<2x128xf32>
    %c0_3 = arith.constant 0 : index
    %c0_4 = arith.constant 0 : index
    %3 = vector.load %arg3[%c0_3, %c0_4] : memref<1x128xf32, #tpu.memory_space<vmem>>, vector<1x128xf32>
    %4 = vector.broadcast %3 : vector<1x128xf32> to vector<2x128xf32>
    %5 = arith.addf %2, %4 : vector<2x128xf32>
    %6 = arith.truncf %5 : vector<2x128xf32> to vector<2x128xbf16>
    %c0_5 = arith.constant 0 : index
    %c0_6 = arith.constant 0 : index
    %7 = vector.load %arg4[%c0_5, %c0_6] : memref<2x128xbf16, #tpu.memory_space<vmem>>, vector<2x128xbf16>
    tpu.vector_store %arg4[%c0_5, %c0_6], %6 {strides = array<i32>} : memref<2x128xbf16, #tpu.memory_space<vmem>>, vector<2x128xbf16>,
    return
  }
  func.func @transform_0(%arg0: i32) -> (i32, i32) {
    %c0_i32 = arith.constant 0 : i32
    %c0_i32_0 = arith.constant 0 : i32
    return %arg0, %c0_i32 : i32, i32
  }
  func.func @transform_1(%arg0: i32) -> (i32, i32) {
    %c0_i32 = arith.constant 0 : i32
    %c0_i32_0 = arith.constant 0 : i32
    %c0_i32_1 = arith.constant 0 : i32
    return %c0_i32, %c0_i32_0 : i32, i32
  }
  func.func @transform_2(%arg0: i32) -> (i32, i32) {
    %c0_i32 = arith.constant 0 : i32
    %c0_i32_0 = arith.constant 0 : i32
    %c0_i32_1 = arith.constant 0 : i32
    return %c0_i32, %c0_i32_0 : i32, i32
  }
  func.func @transform_3(%arg0: i32) -> (i32, i32) {
    %c0_i32 = arith.constant 0 : i32
    %c0_i32_0 = arith.constant 0 : i32
    return %arg0, %c0_i32 : i32, i32
  }
}

</mosaic_0001>

<llo_original>
// kernel: tpu_custom_call.1
$region0: #{tpu_custom_call.1}
  #allocation0 [shape = 'u32[]', space=smem, size = 0x4, offset = 0x4, fixed_abs, tag = 'smem constant byte address 0x4 - core index']
  #allocation1 [shape = 'u32[72,128]{1,0:T(1,128)}', space=vmem, size = 0x9000, scoped, tag = 'internal scratch']
  %s0 = inlined_call_operand.hbm [shape: bf16[2,768], index: 0, kind: input, shape index: {}]
  %s1 = inlined_call_operand.hbm [shape: bf16[768,128], index: 1, kind: input, shape index: {}]
  %s2 = inlined_call_operand.vmem [shape: f32[1,128], index: 2, kind: input, shape index: {}]
  %s3 = inlined_call_operand.hbm [shape: bf16[2,128], index: 3, kind: output, shape index: {}]
  %s4 = sld [smem:[#allocation0]]
  $region30: #{tpu_custom_call.1} parent=0
    _
  %s6 = ssub.s32 1, %s4
  %s7 = scalar_select 0, %s6, %s4
  $region1: #{tpu_custom_call.1} parent=0
    #allocation2 [shape = 'u8[3072]{0}', space=vmem, size = 0xc00, scoped, tag = 'input window, operand 0, single buffered']
    #allocation3 [shape = 's32[1]{0}', space=sflag, size = 0x4, scoped, tag = 'scoped memory for tpu_custom_call.1']
    #allocation4 [shape = 's32[1]{0}', space=sflag, size = 0x4, scoped, tag = 'scoped memory for tpu_custom_call.1']
    #allocation5 [shape = 'u8[196608]{0}', space=vmem, size = 0x30000, scoped, tag = 'input window, operand 1, single buffered']
    #allocation6 [shape = 's32[1]{0}', space=sflag, size = 0x4, scoped, tag = 'scoped memory for tpu_custom_call.1']
    #allocation7 [shape = 'u8[512]{0}', space=vmem, size = 0x400, scoped, tag = 'output window, operand 0, single buffered']
    %8 = vsyncpa [#allocation3], 0
    %9 = vsyncpa [#allocation6], 0
    %10 = vsyncpa [#allocation4], 0
    // Predicated region
    $region2: #{tpu_custom_call.1} parent=1 // pred_check
      _
    $region3: #{tpu_custom_call.1} parent=1 // pred_check_branch
      %12 = sbr.rel (0) target = $region5
    $region4: #{tpu_custom_call.1} parent=1 // pred_region
      %14 = vsyncadd [#allocation3], 0
      %s16 = sshll.u32 %s0, 4
      %s17 = int_to_ptr.hbm [resolvable:$true] %s16
      %s18 = sshll.u32 [#allocation2], 4
      %s19 = int_to_ptr.vmem [resolvable:$true] %s18
      %21 = dma.hbm_to_vmem [thread:$0]  %s17, 96, %s19, [#allocation3]
    $region5: #{tpu_custom_call.1} parent=1 // pred_fallthru
      _
    // Predicated region
    $region6: #{tpu_custom_call.1} parent=1 // pred_check
      _
    $region7: #{tpu_custom_call.1} parent=1 // pred_check_branch
      %23 = sbr.rel (0) target = $region9
    $region8: #{tpu_custom_call.1} parent=1 // pred_region
      %25 = vsyncadd [#allocation6], 0
      %s26 = sshll.u32 %s1, 4
      %s27 = int_to_ptr.hbm [resolvable:$true] %s26
      %s28 = sshll.u32 [#allocation5], 4
      %s29 = int_to_ptr.vmem [resolvable:$true] %s28
      %34 = dma.hbm_to_vmem [thread:$0]  %s27, 6144, %s29, [#allocation6], 64, 64, 4
    $region9: #{tpu_custom_call.1} parent=1 // pred_fallthru
      _
    // Predicated region
    $region10: #{tpu_custom_call.1} parent=1 // pred_check
      _
    $region11: #{tpu_custom_call.1} parent=1 // pred_check_branch
      %36 = sbr.rel (0) target = $region13
    $region12: #{tpu_custom_call.1} parent=1 // pred_region
      _
    $region13: #{tpu_custom_call.1} parent=1 // pred_fallthru
      _
    // Predicated region
    $region14: #{tpu_custom_call.1} parent=1 // pred_check
      _
    $region15: #{tpu_custom_call.1} parent=1 // pred_check_branch
      %38 = sbr.rel (0) target = $region17
    $region16: #{tpu_custom_call.1} parent=1 // pred_region
      %40 = dma.done [#allocation3], 96
    $region17: #{tpu_custom_call.1} parent=1 // pred_fallthru
      _
    // Predicated region
    $region18: #{tpu_custom_call.1} parent=1 // pred_check
      _
    $region19: #{tpu_custom_call.1} parent=1 // pred_check_branch
      %42 = sbr.rel (0) target = $region21
    $region20: #{tpu_custom_call.1} parent=1 // pred_region
      %44 = dma.done [#allocation6], 6144
    $region21: #{tpu_custom_call.1} parent=1 // pred_fallthru
      _
    %v45 = vld [vmem:[#allocation2] sm:$0x3f]
    %v46 = vld [vmem:[#allocation5] sm:$0xf]
    %v47 = vld [vmem:[#allocation5 + $0x4] sm:$0xf]
    %v48 = vld [vmem:[#allocation5 + $0x8] sm:$0xf]
    %v49 = vld [vmem:[#allocation5 + $0xc] sm:$0xf]
    %v50 = vld [vmem:[#allocation5 + $0x10] sm:$0xf]
    %v51 = vld [vmem:[#allocation5 + $0x14] sm:$0xf]
    %v52 = vld [vmem:[#allocation5 + $0x18] sm:$0xf]
    %v53 = vld [vmem:[#allocation5 + $0x1c] sm:$0xf]
    %v54 = vld [vmem:[#allocation5 + $0x20] sm:$0xf]
    %v55 = vld [vmem:[#allocation5 + $0x24] sm:$0xf]
    %v56 = vld [vmem:[#allocation5 + $0x28] sm:$0xf]
    %v57 = vld [vmem:[#allocation5 + $0x2c] sm:$0xf]
    %v58 = vld [vmem:[#allocation5 + $0x30] sm:$0xf]
    %v59 = vld [vmem:[#allocation5 + $0x34] sm:$0xf]
    %v60 = vld [vmem:[#allocation5 + $0x38] sm:$0xf]
    %v61 = vld [vmem:[#allocation5 + $0x3c] sm:$0xf]
    %v62 = vld [vmem:[#allocation5 + $0x40] sm:$0xf]
    %v63 = vld [vmem:[#allocation5 + $0x44] sm:$0xf]
    %v64 = vld [vmem:[#allocation5 + $0x48] sm:$0xf]
    %v65 = vld [vmem:[#allocation5 + $0x4c] sm:$0xf]
    %v66 = vld [vmem:[#allocation5 + $0x50] sm:$0xf]
    %v67 = vld [vmem:[#allocation5 + $0x54] sm:$0xf]
    %v68 = vld [vmem:[#allocation5 + $0x58] sm:$0xf]
    %v69 = vld [vmem:[#allocation5 + $0x5c] sm:$0xf]
    %v70 = vld [vmem:[#allocation5 + $0x60] sm:$0xf]
    %v71 = vld [vmem:[#allocation5 + $0x64] sm:$0xf]
    %v72 = vld [vmem:[#allocation5 + $0x68] sm:$0xf]
    %v73 = vld [vmem:[#allocation5 + $0x6c] sm:$0xf]
    %v74 = vld [vmem:[#allocation5 + $0x70] sm:$0xf]
    %v75 = vld [vmem:[#allocation5 + $0x74] sm:$0xf]
    %v76 = vld [vmem:[#allocation5 + $0x78] sm:$0xf]
    %v77 = vld [vmem:[#allocation5 + $0x7c] sm:$0xf]
    %v78 = vld [vmem:[#allocation5 + $0x80] sm:$0xf]
    %v79 = vld [vmem:[#allocation5 + $0x84] sm:$0xf]
    %v80 = vld [vmem:[#allocation5 + $0x88] sm:$0xf]
    %v81 = vld [vmem:[#allocation5 + $0x8c] sm:$0xf]
    %v82 = vld [vmem:[#allocation5 + $0x90] sm:$0xf]
    %v83 = vld [vmem:[#allocation5 + $0x94] sm:$0xf]
    %v84 = vld [vmem:[#allocation5 + $0x98] sm:$0xf]
    %v85 = vld [vmem:[#allocation5 + $0x9c] sm:$0xf]
    %v86 = vld [vmem:[#allocation5 + $0xa0] sm:$0xf]
    %v87 = vld [vmem:[#allocation5 + $0xa4] sm:$0xf]
    %v88 = vld [vmem:[#allocation5 + $0xa8] sm:$0xf]
    %v89 = vld [vmem:[#allocation5 + $0xac] sm:$0xf]
    %v90 = vld [vmem:[#allocation5 + $0xb0] sm:$0xf]
    %v91 = vld [vmem:[#allocation5 + $0xb4] sm:$0xf]
    %v92 = vld [vmem:[#allocation5 + $0xb8] sm:$0xf]
    %v93 = vld [vmem:[#allocation5 + $0xbc] sm:$0xf]
    %v94 = vld [vmem:[#allocation5 + $0xc0] sm:$0xf]
    %v95 = vld [vmem:[#allocation5 + $0xc4] sm:$0xf]
    %v96 = vld [vmem:[#allocation5 + $0xc8] sm:$0xf]
    %v97 = vld [vmem:[#allocation5 + $0xcc] sm:$0xf]
    %v98 = vld [vmem:[#allocation5 + $0xd0] sm:$0xf]
    %v99 = vld [vmem:[#allocation5 + $0xd4] sm:$0xf]
    %v100 = vld [vmem:[#allocation5 + $0xd8] sm:$0xf]
    %v101 = vld [vmem:[#allocation5 + $0xdc] sm:$0xf]
    %v102 = vld [vmem:[#allocation5 + $0xe0] sm:$0xf]
    %v103 = vld [vmem:[#allocation5 + $0xe4] sm:$0xf]
    %v104 = vld [vmem:[#allocation5 + $0xe8] sm:$0xf]
    %v105 = vld [vmem:[#allocation5 + $0xec] sm:$0xf]
    %v106 = vld [vmem:[#allocation5 + $0xf0] sm:$0xf]
    %v107 = vld [vmem:[#allocation5 + $0xf4] sm:$0xf]
    %v108 = vld [vmem:[#allocation5 + $0xf8] sm:$0xf]
    %v109 = vld [vmem:[#allocation5 + $0xfc] sm:$0xf]
    %v110 = vld [vmem:[#allocation5 + $0x100] sm:$0xf]
    %v111 = vld [vmem:[#allocation5 + $0x104] sm:$0xf]
    %v112 = vld [vmem:[#allocation5 + $0x108] sm:$0xf]
    %v113 = vld [vmem:[#allocation5 + $0x10c] sm:$0xf]
    %v114 = vld [vmem:[#allocation5 + $0x110] sm:$0xf]
    %v115 = vld [vmem:[#allocation5 + $0x114] sm:$0xf]
    %v116 = vld [vmem:[#allocation5 + $0x118] sm:$0xf]
    %v117 = vld [vmem:[#allocation5 + $0x11c] sm:$0xf]
    %v118 = vld [vmem:[#allocation5 + $0x120] sm:$0xf]
    %v119 = vld [vmem:[#allocation5 + $0x124] sm:$0xf]
    %v120 = vld [vmem:[#allocation5 + $0x128] sm:$0xf]
    %v121 = vld [vmem:[#allocation5 + $0x12c] sm:$0xf]
    %v122 = vld [vmem:[#allocation5 + $0x130] sm:$0xf]
    %v123 = vld [vmem:[#allocation5 + $0x134] sm:$0xf]
    %v124 = vld [vmem:[#allocation5 + $0x138] sm:$0xf]
    %v125 = vld [vmem:[#allocation5 + $0x13c] sm:$0xf]
    %v126 = vld [vmem:[#allocation5 + $0x140] sm:$0xf]
    %v127 = vld [vmem:[#allocation5 + $0x144] sm:$0xf]
    %v128 = vld [vmem:[#allocation5 + $0x148] sm:$0xf]
    %v129 = vld [vmem:[#allocation5 + $0x14c] sm:$0xf]
    %v130 = vld [vmem:[#allocation5 + $0x150] sm:$0xf]
    %v131 = vld [vmem:[#allocation5 + $0x154] sm:$0xf]
    %v132 = vld [vmem:[#allocation5 + $0x158] sm:$0xf]
    %v133 = vld [vmem:[#allocation5 + $0x15c] sm:$0xf]
    %v134 = vld [vmem:[#allocation5 + $0x160] sm:$0xf]
    %v135 = vld [vmem:[#allocation5 + $0x164] sm:$0xf]
    %v136 = vld [vmem:[#allocation5 + $0x168] sm:$0xf]
    %v137 = vld [vmem:[#allocation5 + $0x16c] sm:$0xf]
    %v138 = vld [vmem:[#allocation5 + $0x170] sm:$0xf]
    %v139 = vld [vmem:[#allocation5 + $0x174] sm:$0xf]
    %v140 = vld [vmem:[#allocation5 + $0x178] sm:$0xf]
    %v141 = vld [vmem:[#allocation5 + $0x17c] sm:$0xf]
    %v142 = vld [vmem:[%s2] sm:$0x1]
    %v144 = vperm.slane %v142, 0
    %147 = vst [vmem:[#allocation1] ss:$9 sm:$0xff] %v45
    %v148 = vld [vmem:[#allocation1] sm:$0xff]
    %v149 = vld [vmem:[#allocation1 + $0x9] sm:$0xff]
    %v150 = vld [vmem:[#allocation1 + $0x12] sm:$0xff]
    %v151 = vld [vmem:[#allocation1 + $0x1b] sm:$0xff]
    %v152 = vld [vmem:[#allocation1 + $0x24] sm:$0xff]
    %v153 = vld [vmem:[#allocation1 + $0x2d] sm:$0xff]
    %v256 = vunpack.c.l.b16 %v46
    %v257 = vunpack.c.l.b16 %v47
    %v258 = vunpack.c.l.b16 %v48
    %v259 = vunpack.c.l.b16 %v49
    %v260 = vunpack.c.l.b16 %v50
    %v261 = vunpack.c.l.b16 %v51
    %v262 = vunpack.c.l.b16 %v52
    %v263 = vunpack.c.l.b16 %v53
    %v264 = vunpack.c.l.b16 %v54
    %v265 = vunpack.c.l.b16 %v55
    %v266 = vunpack.c.l.b16 %v56
    %v267 = vunpack.c.l.b16 %v57
    %v268 = vunpack.c.l.b16 %v58
    %v269 = vunpack.c.l.b16 %v59
    %v270 = vunpack.c.l.b16 %v60
    %v271 = vunpack.c.l.b16 %v61
    %v272 = vunpack.c.l.b16 %v62
    %v273 = vunpack.c.l.b16 %v63
    %v274 = vunpack.c.l.b16 %v64
    %v275 = vunpack.c.l.b16 %v65
    %v276 = vunpack.c.l.b16 %v66
    %v277 = vunpack.c.l.b16 %v67
    %v278 = vunpack.c.l.b16 %v68
    %v279 = vunpack.c.l.b16 %v69
    %v280 = vunpack.c.l.b16 %v70
    %v281 = vunpack.c.l.b16 %v71
    %v282 = vunpack.c.l.b16 %v72
    %v283 = vunpack.c.l.b16 %v73
    %v284 = vunpack.c.l.b16 %v74
    %v285 = vunpack.c.l.b16 %v75
    %v286 = vunpack.c.l.b16 %v76
    %v287 = vunpack.c.l.b16 %v77
    %v288 = vunpack.c.l.b16 %v78
    %v289 = vunpack.c.l.b16 %v79
    %v290 = vunpack.c.l.b16 %v80
    %v291 = vunpack.c.l.b16 %v81
    %v292 = vunpack.c.l.b16 %v82
    %v293 = vunpack.c.l.b16 %v83
    %v294 = vunpack.c.l.b16 %v84
    %v295 = vunpack.c.l.b16 %v85
    %v296 = vunpack.c.l.b16 %v86
    %v297 = vunpack.c.l.b16 %v87
    %v298 = vunpack.c.l.b16 %v88
    %v299 = vunpack.c.l.b16 %v89
    %v300 = vunpack.c.l.b16 %v90
    %v301 = vunpack.c.l.b16 %v91
    %v302 = vunpack.c.l.b16 %v92
    %v303 = vunpack.c.l.b16 %v93
    %v304 = vunpack.c.l.b16 %v94
    %v305 = vunpack.c.l.b16 %v95
    %v306 = vunpack.c.l.b16 %v96
    %v307 = vunpack.c.l.b16 %v97
    %v308 = vunpack.c.l.b16 %v98
    %v309 = vunpack.c.l.b16 %v99
    %v310 = vunpack.c.l.b16 %v100
    %v311 = vunpack.c.l.b16 %v101
    %v312 = vunpack.c.l.b16 %v102
    %v313 = vunpack.c.l.b16 %v103
    %v314 = vunpack.c.l.b16 %v104
    %v315 = vunpack.c.l.b16 %v105
    %v316 = vunpack.c.l.b16 %v106
    %v317 = vunpack.c.l.b16 %v107
    %v318 = vunpack.c.l.b16 %v108
    %v319 = vunpack.c.l.b16 %v109
    %v320 = vunpack.c.l.b16 %v110
    %v321 = vunpack.c.l.b16 %v111
    %v322 = vunpack.c.l.b16 %v112
    %v323 = vunpack.c.l.b16 %v113
    %v324 = vunpack.c.l.b16 %v114
    %v325 = vunpack.c.l.b16 %v115
    %v326 = vunpack.c.l.b16 %v116
    %v327 = vunpack.c.l.b16 %v117
    %v328 = vunpack.c.l.b16 %v118
    %v329 = vunpack.c.l.b16 %v119
    %v330 = vunpack.c.l.b16 %v120
    %v331 = vunpack.c.l.b16 %v121
    %v332 = vunpack.c.l.b16 %v122
    %v333 = vunpack.c.l.b16 %v123
    %v334 = vunpack.c.l.b16 %v124
    %v335 = vunpack.c.l.b16 %v125
    %v336 = vunpack.c.l.b16 %v126
    %v337 = vunpack.c.l.b16 %v127
    %v338 = vunpack.c.l.b16 %v128
    %v339 = vunpack.c.l.b16 %v129
    %v340 = vunpack.c.l.b16 %v130
    %v341 = vunpack.c.l.b16 %v131
    %v342 = vunpack.c.l.b16 %v132
    %v343 = vunpack.c.l.b16 %v133
    %v344 = vunpack.c.l.b16 %v134
    %v345 = vunpack.c.l.b16 %v135
    %v346 = vunpack.c.l.b16 %v136
    %v347 = vunpack.c.l.b16 %v137
    %v348 = vunpack.c.l.b16 %v138
    %v349 = vunpack.c.l.b16 %v139
    %v350 = vunpack.c.l.b16 %v140
    %v351 = vunpack.c.l.b16 %v141
    %v352 = vpack.c.b16 %v257, %v256
    %v353 = vpack.c.b16 %v259, %v258
    %v354 = vpack.c.b16 %v261, %v260
    %v355 = vpack.c.b16 %v263, %v262
    %v356 = vpack.c.b16 %v265, %v264
    %v357 = vpack.c.b16 %v267, %v266
    %v358 = vpack.c.b16 %v269, %v268
    %v359 = vpack.c.b16 %v271, %v270
    %v360 = vpack.c.b16 %v273, %v272
    %v361 = vpack.c.b16 %v275, %v274
    %v362 = vpack.c.b16 %v277, %v276
    %v363 = vpack.c.b16 %v279, %v278
    %v364 = vpack.c.b16 %v281, %v280
    %v365 = vpack.c.b16 %v283, %v282
    %v366 = vpack.c.b16 %v285, %v284
    %v367 = vpack.c.b16 %v287, %v286
    %v368 = vpack.c.b16 %v289, %v288
    %v369 = vpack.c.b16 %v291, %v290
    %v370 = vpack.c.b16 %v293, %v292
    %v371 = vpack.c.b16 %v295, %v294
    %v372 = vpack.c.b16 %v297, %v296
    %v373 = vpack.c.b16 %v299, %v298
    %v374 = vpack.c.b16 %v301, %v300
    %v375 = vpack.c.b16 %v303, %v302
    %v376 = vpack.c.b16 %v305, %v304
    %v377 = vpack.c.b16 %v307, %v306
    %v378 = vpack.c.b16 %v309, %v308
    %v379 = vpack.c.b16 %v311, %v310
    %v380 = vpack.c.b16 %v313, %v312
    %v381 = vpack.c.b16 %v315, %v314
    %v382 = vpack.c.b16 %v317, %v316
    %v383 = vpack.c.b16 %v319, %v318
    %v384 = vpack.c.b16 %v321, %v320
    %v385 = vpack.c.b16 %v323, %v322
    %v386 = vpack.c.b16 %v325, %v324
    %v387 = vpack.c.b16 %v327, %v326
    %v388 = vpack.c.b16 %v329, %v328
    %v389 = vpack.c.b16 %v331, %v330
    %v390 = vpack.c.b16 %v333, %v332
    %v391 = vpack.c.b16 %v335, %v334
    %v392 = vpack.c.b16 %v337, %v336
    %v393 = vpack.c.b16 %v339, %v338
    %v394 = vpack.c.b16 %v341, %v340
    %v395 = vpack.c.b16 %v343, %v342
    %v396 = vpack.c.b16 %v345, %v344
    %v397 = vpack.c.b16 %v347, %v346
    %v398 = vpack.c.b16 %v349, %v348
    %v399 = vpack.c.b16 %v351, %v350
    %448 = vmatpush.bf16.msra.mxu0 %v359
    %449 = vmatpush.bf16.msra.mxu0 %v358
    %450 = vmatpush.bf16.msra.mxu0 %v357
    %451 = vmatpush.bf16.msra.mxu0 %v356
    %452 = vmatpush.bf16.msra.mxu0 %v355
    %453 = vmatpush.bf16.msra.mxu0 %v354
    %454 = vmatpush.bf16.msra.mxu0 %v353
    %455 = vmatpush.bf16.msra.mxu0 %v352
    %456 = vmatmul.bf16.gmra.mxu0 %v148
    %v457 = vpop.f32.mrf.mxu0
    %v458 = vadd.f32 %v144, %v457
    %v459 = vpop.f32.mrf.mxu0
    %460 = vdwg.mxu0
    %461 = vmatpush.bf16.msra.mxu0 %v367
    %462 = vmatpush.bf16.msra.mxu0 %v366
    %463 = vmatpush.bf16.msra.mxu0 %v365
    %464 = vmatpush.bf16.msra.mxu0 %v364
    %465 = vmatpush.bf16.msra.mxu0 %v363
    %466 = vmatpush.bf16.msra.mxu0 %v362
    %467 = vmatpush.bf16.msra.mxu0 %v361
    %468 = vmatpush.bf16.msra.mxu0 %v360
    %469 = vmatmul.bf16.gmra.mxu0 %v149
    %v470 = vpop.f32.mrf.mxu0
    %v471 = vadd.f32 %v458, %v470
    %v472 = vpop.f32.mrf.mxu0
    %473 = vdwg.mxu0
    %474 = vmatpush.bf16.msra.mxu0 %v375
    %475 = vmatpush.bf16.msra.mxu0 %v374
    %476 = vmatpush.bf16.msra.mxu0 %v373
    %477 = vmatpush.bf16.msra.mxu0 %v372
    %478 = vmatpush.bf16.msra.mxu0 %v371
    %479 = vmatpush.bf16.msra.mxu0 %v370
    %480 = vmatpush.bf16.msra.mxu0 %v369
    %481 = vmatpush.bf16.msra.mxu0 %v368
    %482 = vmatmul.bf16.gmra.mxu0 %v150
    %v483 = vpop.f32.mrf.mxu0
    %v484 = vadd.f32 %v471, %v483
    %v485 = vpop.f32.mrf.mxu0
    %486 = vdwg.mxu0
    %487 = vmatpush.bf16.msra.mxu0 %v383
    %488 = vmatpush.bf16.msra.mxu0 %v382
    %489 = vmatpush.bf16.msra.mxu0 %v381
    %490 = vmatpush.bf16.msra.mxu0 %v380
    %491 = vmatpush.bf16.msra.mxu0 %v379
    %492 = vmatpush.bf16.msra.mxu0 %v378
    %493 = vmatpush.bf16.msra.mxu0 %v377
    %494 = vmatpush.bf16.msra.mxu0 %v376
    %495 = vmatmul.bf16.gmra.mxu0 %v151
    %v496 = vpop.f32.mrf.mxu0
    %v497 = vadd.f32 %v484, %v496
    %v498 = vpop.f32.mrf.mxu0
    %499 = vdwg.mxu0
    %500 = vmatpush.bf16.msra.mxu0 %v391
    %501 = vmatpush.bf16.msra.mxu0 %v390
    %502 = vmatpush.bf16.msra.mxu0 %v389
    %503 = vmatpush.bf16.msra.mxu0 %v388
    %504 = vmatpush.bf16.msra.mxu0 %v387
    %505 = vmatpush.bf16.msra.mxu0 %v386
    %506 = vmatpush.bf16.msra.mxu0 %v385
    %507 = vmatpush.bf16.msra.mxu0 %v384
    %508 = vmatmul.bf16.gmra.mxu0 %v152
    %v509 = vpop.f32.mrf.mxu0
    %v510 = vadd.f32 %v497, %v509
    %v511 = vpop.f32.mrf.mxu0
    %512 = vdwg.mxu0
    %513 = vmatpush.bf16.msra.mxu0 %v399
    %514 = vmatpush.bf16.msra.mxu0 %v398
    %515 = vmatpush.bf16.msra.mxu0 %v397
    %516 = vmatpush.bf16.msra.mxu0 %v396
    %517 = vmatpush.bf16.msra.mxu0 %v395
    %518 = vmatpush.bf16.msra.mxu0 %v394
    %519 = vmatpush.bf16.msra.mxu0 %v393
    %520 = vmatpush.bf16.msra.mxu0 %v392
    %521 = vmatmul.bf16.gmra.mxu0 %v153
    %v522 = vpop.f32.mrf.mxu0
    %v523 = vadd.f32 %v510, %v522
    %v524 = vpop.f32.mrf.mxu0
    %525 = vdwg.mxu0
    %v526 = vpack.c.bf16 %v523, %v523
    %527 = vst [vmem:[#allocation7] sm:$0x1] %v526
    // Predicated region
    $region22: #{tpu_custom_call.1} parent=1 // pred_check
      _
    $region23: #{tpu_custom_call.1} parent=1 // pred_check_branch
      %529 = sbr.rel (0) target = $region25
    $region24: #{tpu_custom_call.1} parent=1 // pred_region
      %531 = vsyncadd [#allocation4], 0
      %s533 = sshll.u32 [#allocation7], 4
      %s534 = int_to_ptr.vmem [resolvable:$true] %s533
      %s535 = sshll.u32 %s3, 4
      %s536 = int_to_ptr.hbm [resolvable:$true] %s535
      %538 = dma.vmem_to_hbm [thread:$0]  %s534, 16, %s536, [#allocation4]
    $region25: #{tpu_custom_call.1} parent=1 // pred_fallthru
      _
    // Predicated region
    $region26: #{tpu_custom_call.1} parent=1 // pred_check
      _
    $region27: #{tpu_custom_call.1} parent=1 // pred_check_branch
      %540 = sbr.rel (0) target = $region29
    $region28: #{tpu_custom_call.1} parent=1 // pred_region
      %542 = dma.done [#allocation4], 16
    $region29: #{tpu_custom_call.1} parent=1 // pred_fallthru
      _
    %543 = vsyncpa [#allocation3], 1
    %544 = vsyncpa [#allocation6], 1
    %545 = vsyncpa [#allocation4], 1

// kernel: tpu_custom_call.1
$region0: #{tpu_custom_call.1}
  #allocation0 [shape = 'u32[]', space=smem, size = 0x4, offset = 0x4, fixed_abs, tag = 'smem constant byte address 0x4 - core index']
  #allocation1 [shape = 'u32[72,128]{1,0:T(1,128)}', space=vmem, size = 0x9000, scoped, tag = 'internal scratch']
  %s0 = inlined_call_operand.hbm [shape: bf16[2,768], index: 0, kind: input, shape index: {}]
  %s1 = inlined_call_operand.hbm [shape: bf16[768,128], index: 1, kind: input, shape index: {}]
  %s2 = inlined_call_operand.vmem [shape: f32[1,128], index: 2, kind: input, shape index: {}]
  %s3 = inlined_call_operand.hbm [shape: bf16[2,128], index: 3, kind: output, shape index: {}]
  %s4 = sld [smem:[#allocation0]]
  $region30: #{tpu_custom_call.1} parent=0
    _
  %s6 = ssub.s32 1, %s4
  %s7 = scalar_select 0, %s6, %s4
  $region1: #{tpu_custom_call.1} parent=0
    #allocation2 [shape = 'u8[3072]{0}', space=vmem, size = 0xc00, scoped, tag = 'input window, operand 0, single buffered']
    #allocation3 [shape = 's32[1]{0}', space=sflag, size = 0x4, scoped, tag = 'scoped memory for tpu_custom_call.1']
    #allocation4 [shape = 's32[1]{0}', space=sflag, size = 0x4, scoped, tag = 'scoped memory for tpu_custom_call.1']
    #allocation5 [shape = 'u8[196608]{0}', space=vmem, size = 0x30000, scoped, tag = 'input window, operand 1, single buffered']
    #allocation6 [shape = 's32[1]{0}', space=sflag, size = 0x4, scoped, tag = 'scoped memory for tpu_custom_call.1']
    #allocation7 [shape = 'u8[512]{0}', space=vmem, size = 0x400, scoped, tag = 'output window, operand 0, single buffered']
    %8 = vsyncpa [#allocation3], 0
    %9 = vsyncpa [#allocation6], 0
    %10 = vsyncpa [#allocation4], 0
    // Predicated region
    $region2: #{tpu_custom_call.1} parent=1 // pred_check
      _
    $region3: #{tpu_custom_call.1} parent=1 // pred_check_branch
      %12 = sbr.rel (0) target = $region5
    $region4: #{tpu_custom_call.1} parent=1 // pred_region
      %14 = vsyncadd [#allocation3], 0
      %s16 = sshll.u32 %s0, 4
      %s17 = int_to_ptr.hbm [resolvable:$true] %s16
      %s18 = sshll.u32 [#allocation2], 4
      %s19 = int_to_ptr.vmem [resolvable:$true] %s18
      %21 = dma.hbm_to_vmem [thread:$0]  %s17, 96, %s19, [#allocation3]
    $region5: #{tpu_custom_call.1} parent=1 // pred_fallthru
      _
    // Predicated region
    $region6: #{tpu_custom_call.1} parent=1 // pred_check
      _
    $region7: #{tpu_custom_call.1} parent=1 // pred_check_branch
      %23 = sbr.rel (0) target = $region9
    $region8: #{tpu_custom_call.1} parent=1 // pred_region
      %25 = vsyncadd [#allocation6], 0
      %s26 = sshll.u32 %s1, 4
      %s27 = int_to_ptr.hbm [resolvable:$true] %s26
      %s28 = sshll.u32 [#allocation5], 4
      %s29 = int_to_ptr.vmem [resolvable:$true] %s28
      %34 = dma.hbm_to_vmem [thread:$0]  %s27, 6144, %s29, [#allocation6], 64, 64, 4
    $region9: #{tpu_custom_call.1} parent=1 // pred_fallthru
      _
    // Predicated region
    $region10: #{tpu_custom_call.1} parent=1 // pred_check
      _
    $region11: #{tpu_custom_call.1} parent=1 // pred_check_branch
      %36 = sbr.rel (0) target = $region13
    $region12: #{tpu_custom_call.1} parent=1 // pred_region
      _
    $region13: #{tpu_custom_call.1} parent=1 // pred_fallthru
      _
    // Predicated region
    $region14: #{tpu_custom_call.1} parent=1 // pred_check
      _
    $region15: #{tpu_custom_call.1} parent=1 // pred_check_branch
      %38 = sbr.rel (0) target = $region17
    $region16: #{tpu_custom_call.1} parent=1 // pred_region
      %40 = dma.done [#allocation3], 96
    $region17: #{tpu_custom_call.1} parent=1 // pred_fallthru
      _
    // Predicated region
    $region18: #{tpu_custom_call.1} parent=1 // pred_check
      _
    $region19: #{tpu_custom_call.1} parent=1 // pred_check_branch
      %42 = sbr.rel (0) target = $region21
    $region20: #{tpu_custom_call.1} parent=1 // pred_region
      %44 = dma.done [#allocation6], 6144
    $region21: #{tpu_custom_call.1} parent=1 // pred_fallthru
      _
    %v45 = vld [vmem:[#allocation2] sm:$0x3f]
    %v46 = vld [vmem:[#allocation5] sm:$0xf]
    %v47 = vld [vmem:[#allocation5 + $0x4] sm:$0xf]
    %v48 = vld [vmem:[#allocation5 + $0x8] sm:$0xf]
    %v49 = vld [vmem:[#allocation5 + $0xc] sm:$0xf]
    %v50 = vld [vmem:[#allocation5 + $0x10] sm:$0xf]
    %v51 = vld [vmem:[#allocation5 + $0x14] sm:$0xf]
    %v52 = vld [vmem:[#allocation5 + $0x18] sm:$0xf]
    %v53 = vld [vmem:[#allocation5 + $0x1c] sm:$0xf]
    %v54 = vld [vmem:[#allocation5 + $0x20] sm:$0xf]
    %v55 = vld [vmem:[#allocation5 + $0x24] sm:$0xf]
    %v56 = vld [vmem:[#allocation5 + $0x28] sm:$0xf]
    %v57 = vld [vmem:[#allocation5 + $0x2c] sm:$0xf]
    %v58 = vld [vmem:[#allocation5 + $0x30] sm:$0xf]
    %v59 = vld [vmem:[#allocation5 + $0x34] sm:$0xf]
    %v60 = vld [vmem:[#allocation5 + $0x38] sm:$0xf]
    %v61 = vld [vmem:[#allocation5 + $0x3c] sm:$0xf]
    %v62 = vld [vmem:[#allocation5 + $0x40] sm:$0xf]
    %v63 = vld [vmem:[#allocation5 + $0x44] sm:$0xf]
    %v64 = vld [vmem:[#allocation5 + $0x48] sm:$0xf]
    %v65 = vld [vmem:[#allocation5 + $0x4c] sm:$0xf]
    %v66 = vld [vmem:[#allocation5 + $0x50] sm:$0xf]
    %v67 = vld [vmem:[#allocation5 + $0x54] sm:$0xf]
    %v68 = vld [vmem:[#allocation5 + $0x58] sm:$0xf]
    %v69 = vld [vmem:[#allocation5 + $0x5c] sm:$0xf]
    %v70 = vld [vmem:[#allocation5 + $0x60] sm:$0xf]
    %v71 = vld [vmem:[#allocation5 + $0x64] sm:$0xf]
    %v72 = vld [vmem:[#allocation5 + $0x68] sm:$0xf]
    %v73 = vld [vmem:[#allocation5 + $0x6c] sm:$0xf]
    %v74 = vld [vmem:[#allocation5 + $0x70] sm:$0xf]
    %v75 = vld [vmem:[#allocation5 + $0x74] sm:$0xf]
    %v76 = vld [vmem:[#allocation5 + $0x78] sm:$0xf]
    %v77 = vld [vmem:[#allocation5 + $0x7c] sm:$0xf]
    %v78 = vld [vmem:[#allocation5 + $0x80] sm:$0xf]
    %v79 = vld [vmem:[#allocation5 + $0x84] sm:$0xf]
    %v80 = vld [vmem:[#allocation5 + $0x88] sm:$0xf]
    %v81 = vld [vmem:[#allocation5 + $0x8c] sm:$0xf]
    %v82 = vld [vmem:[#allocation5 + $0x90] sm:$0xf]
    %v83 = vld [vmem:[#allocation5 + $0x94] sm:$0xf]
    %v84 = vld [vmem:[#allocation5 + $0x98] sm:$0xf]
    %v85 = vld [vmem:[#allocation5 + $0x9c] sm:$0xf]
    %v86 = vld [vmem:[#allocation5 + $0xa0] sm:$0xf]
    %v87 = vld [vmem:[#allocation5 + $0xa4] sm:$0xf]
    %v88 = vld [vmem:[#allocation5 + $0xa8] sm:$0xf]
    %v89 = vld [vmem:[#allocation5 + $0xac] sm:$0xf]
    %v90 = vld [vmem:[#allocation5 + $0xb0] sm:$0xf]
    %v91 = vld [vmem:[#allocation5 + $0xb4] sm:$0xf]
    %v92 = vld [vmem:[#allocation5 + $0xb8] sm:$0xf]
    %v93 = vld [vmem:[#allocation5 + $0xbc] sm:$0xf]
    %v94 = vld [vmem:[#allocation5 + $0xc0] sm:$0xf]
    %v95 = vld [vmem:[#allocation5 + $0xc4] sm:$0xf]
    %v96 = vld [vmem:[#allocation5 + $0xc8] sm:$0xf]
    %v97 = vld [vmem:[#allocation5 + $0xcc] sm:$0xf]
    %v98 = vld [vmem:[#allocation5 + $0xd0] sm:$0xf]
    %v99 = vld [vmem:[#allocation5 + $0xd4] sm:$0xf]
    %v100 = vld [vmem:[#allocation5 + $0xd8] sm:$0xf]
    %v101 = vld [vmem:[#allocation5 + $0xdc] sm:$0xf]
    %v102 = vld [vmem:[#allocation5 + $0xe0] sm:$0xf]
    %v103 = vld [vmem:[#allocation5 + $0xe4] sm:$0xf]
    %v104 = vld [vmem:[#allocation5 + $0xe8] sm:$0xf]
    %v105 = vld [vmem:[#allocation5 + $0xec] sm:$0xf]
    %v106 = vld [vmem:[#allocation5 + $0xf0] sm:$0xf]
    %v107 = vld [vmem:[#allocation5 + $0xf4] sm:$0xf]
    %v108 = vld [vmem:[#allocation5 + $0xf8] sm:$0xf]
    %v109 = vld [vmem:[#allocation5 + $0xfc] sm:$0xf]
    %v110 = vld [vmem:[#allocation5 + $0x100] sm:$0xf]
    %v111 = vld [vmem:[#allocation5 + $0x104] sm:$0xf]
    %v112 = vld [vmem:[#allocation5 + $0x108] sm:$0xf]
    %v113 = vld [vmem:[#allocation5 + $0x10c] sm:$0xf]
    %v114 = vld [vmem:[#allocation5 + $0x110] sm:$0xf]
    %v115 = vld [vmem:[#allocation5 + $0x114] sm:$0xf]
    %v116 = vld [vmem:[#allocation5 + $0x118] sm:$0xf]
    %v117 = vld [vmem:[#allocation5 + $0x11c] sm:$0xf]
    %v118 = vld [vmem:[#allocation5 + $0x120] sm:$0xf]
    %v119 = vld [vmem:[#allocation5 + $0x124] sm:$0xf]
    %v120 = vld [vmem:[#allocation5 + $0x128] sm:$0xf]
    %v121 = vld [vmem:[#allocation5 + $0x12c] sm:$0xf]
    %v122 = vld [vmem:[#allocation5 + $0x130] sm:$0xf]
    %v123 = vld [vmem:[#allocation5 + $0x134] sm:$0xf]
    %v124 = vld [vmem:[#allocation5 + $0x138] sm:$0xf]
    %v125 = vld [vmem:[#allocation5 + $0x13c] sm:$0xf]
    %v126 = vld [vmem:[#allocation5 + $0x140] sm:$0xf]
    %v127 = vld [vmem:[#allocation5 + $0x144] sm:$0xf]
    %v128 = vld [vmem:[#allocation5 + $0x148] sm:$0xf]
    %v129 = vld [vmem:[#allocation5 + $0x14c] sm:$0xf]
    %v130 = vld [vmem:[#allocation5 + $0x150] sm:$0xf]
    %v131 = vld [vmem:[#allocation5 + $0x154] sm:$0xf]
    %v132 = vld [vmem:[#allocation5 + $0x158] sm:$0xf]
    %v133 = vld [vmem:[#allocation5 + $0x15c] sm:$0xf]
    %v134 = vld [vmem:[#allocation5 + $0x160] sm:$0xf]
    %v135 = vld [vmem:[#allocation5 + $0x164] sm:$0xf]
    %v136 = vld [vmem:[#allocation5 + $0x168] sm:$0xf]
    %v137 = vld [vmem:[#allocation5 + $0x16c] sm:$0xf]
    %v138 = vld [vmem:[#allocation5 + $0x170] sm:$0xf]
    %v139 = vld [vmem:[#allocation5 + $0x174] sm:$0xf]
    %v140 = vld [vmem:[#allocation5 + $0x178] sm:$0xf]
    %v141 = vld [vmem:[#allocation5 + $0x17c] sm:$0xf]
    %v142 = vld [vmem:[%s2] sm:$0x1]
    %v144 = vperm.slane %v142, 0
    %147 = vst [vmem:[#allocation1] ss:$9 sm:$0xff] %v45
    %v148 = vld [vmem:[#allocation1] sm:$0xff]
    %v149 = vld [vmem:[#allocation1 + $0x9] sm:$0xff]
    %v150 = vld [vmem:[#allocation1 + $0x12] sm:$0xff]
    %v151 = vld [vmem:[#allocation1 + $0x1b] sm:$0xff]
    %v152 = vld [vmem:[#allocation1 + $0x24] sm:$0xff]
    %v153 = vld [vmem:[#allocation1 + $0x2d] sm:$0xff]
    %v256 = vunpack.c.l.b16 %v46
    %v257 = vunpack.c.l.b16 %v47
    %v258 = vunpack.c.l.b16 %v48
    %v259 = vunpack.c.l.b16 %v49
    %v260 = vunpack.c.l.b16 %v50
    %v261 = vunpack.c.l.b16 %v51
    %v262 = vunpack.c.l.b16 %v52
    %v263 = vunpack.c.l.b16 %v53
    %v264 = vunpack.c.l.b16 %v54
    %v265 = vunpack.c.l.b16 %v55
    %v266 = vunpack.c.l.b16 %v56
    %v267 = vunpack.c.l.b16 %v57
    %v268 = vunpack.c.l.b16 %v58
    %v269 = vunpack.c.l.b16 %v59
    %v270 = vunpack.c.l.b16 %v60
    %v271 = vunpack.c.l.b16 %v61
    %v272 = vunpack.c.l.b16 %v62
    %v273 = vunpack.c.l.b16 %v63
    %v274 = vunpack.c.l.b16 %v64
    %v275 = vunpack.c.l.b16 %v65
    %v276 = vunpack.c.l.b16 %v66
    %v277 = vunpack.c.l.b16 %v67
    %v278 = vunpack.c.l.b16 %v68
    %v279 = vunpack.c.l.b16 %v69
    %v280 = vunpack.c.l.b16 %v70
    %v281 = vunpack.c.l.b16 %v71
    %v282 = vunpack.c.l.b16 %v72
    %v283 = vunpack.c.l.b16 %v73
    %v284 = vunpack.c.l.b16 %v74
    %v285 = vunpack.c.l.b16 %v75
    %v286 = vunpack.c.l.b16 %v76
    %v287 = vunpack.c.l.b16 %v77
    %v288 = vunpack.c.l.b16 %v78
    %v289 = vunpack.c.l.b16 %v79
    %v290 = vunpack.c.l.b16 %v80
    %v291 = vunpack.c.l.b16 %v81
    %v292 = vunpack.c.l.b16 %v82
    %v293 = vunpack.c.l.b16 %v83
    %v294 = vunpack.c.l.b16 %v84
    %v295 = vunpack.c.l.b16 %v85
    %v296 = vunpack.c.l.b16 %v86
    %v297 = vunpack.c.l.b16 %v87
    %v298 = vunpack.c.l.b16 %v88
    %v299 = vunpack.c.l.b16 %v89
    %v300 = vunpack.c.l.b16 %v90
    %v301 = vunpack.c.l.b16 %v91
    %v302 = vunpack.c.l.b16 %v92
    %v303 = vunpack.c.l.b16 %v93
    %v304 = vunpack.c.l.b16 %v94
    %v305 = vunpack.c.l.b16 %v95
    %v306 = vunpack.c.l.b16 %v96
    %v307 = vunpack.c.l.b16 %v97
    %v308 = vunpack.c.l.b16 %v98
    %v309 = vunpack.c.l.b16 %v99
    %v310 = vunpack.c.l.b16 %v100
    %v311 = vunpack.c.l.b16 %v101
    %v312 = vunpack.c.l.b16 %v102
    %v313 = vunpack.c.l.b16 %v103
    %v314 = vunpack.c.l.b16 %v104
    %v315 = vunpack.c.l.b16 %v105
    %v316 = vunpack.c.l.b16 %v106
    %v317 = vunpack.c.l.b16 %v107
    %v318 = vunpack.c.l.b16 %v108
    %v319 = vunpack.c.l.b16 %v109
    %v320 = vunpack.c.l.b16 %v110
    %v321 = vunpack.c.l.b16 %v111
    %v322 = vunpack.c.l.b16 %v112
    %v323 = vunpack.c.l.b16 %v113
    %v324 = vunpack.c.l.b16 %v114
    %v325 = vunpack.c.l.b16 %v115
    %v326 = vunpack.c.l.b16 %v116
    %v327 = vunpack.c.l.b16 %v117
    %v328 = vunpack.c.l.b16 %v118
    %v329 = vunpack.c.l.b16 %v119
    %v330 = vunpack.c.l.b16 %v120
    %v331 = vunpack.c.l.b16 %v121
    %v332 = vunpack.c.l.b16 %v122
    %v333 = vunpack.c.l.b16 %v123
    %v334 = vunpack.c.l.b16 %v124
    %v335 = vunpack.c.l.b16 %v125
    %v336 = vunpack.c.l.b16 %v126
    %v337 = vunpack.c.l.b16 %v127
    %v338 = vunpack.c.l.b16 %v128
    %v339 = vunpack.c.l.b16 %v129
    %v340 = vunpack.c.l.b16 %v130
    %v341 = vunpack.c.l.b16 %v131
    %v342 = vunpack.c.l.b16 %v132
    %v343 = vunpack.c.l.b16 %v133
    %v344 = vunpack.c.l.b16 %v134
    %v345 = vunpack.c.l.b16 %v135
    %v346 = vunpack.c.l.b16 %v136
    %v347 = vunpack.c.l.b16 %v137
    %v348 = vunpack.c.l.b16 %v138
    %v349 = vunpack.c.l.b16 %v139
    %v350 = vunpack.c.l.b16 %v140
    %v351 = vunpack.c.l.b16 %v141
    %v352 = vpack.c.b16 %v257, %v256
    %v353 = vpack.c.b16 %v259, %v258
    %v354 = vpack.c.b16 %v261, %v260
    %v355 = vpack.c.b16 %v263, %v262
    %v356 = vpack.c.b16 %v265, %v264
    %v357 = vpack.c.b16 %v267, %v266
    %v358 = vpack.c.b16 %v269, %v268
    %v359 = vpack.c.b16 %v271, %v270
    %v360 = vpack.c.b16 %v273, %v272
    %v361 = vpack.c.b16 %v275, %v274
    %v362 = vpack.c.b16 %v277, %v276
    %v363 = vpack.c.b16 %v279, %v278
    %v364 = vpack.c.b16 %v281, %v280
    %v365 = vpack.c.b16 %v283, %v282
    %v366 = vpack.c.b16 %v285, %v284
    %v367 = vpack.c.b16 %v287, %v286
    %v368 = vpack.c.b16 %v289, %v288
    %v369 = vpack.c.b16 %v291, %v290
    %v370 = vpack.c.b16 %v293, %v292
    %v371 = vpack.c.b16 %v295, %v294
    %v372 = vpack.c.b16 %v297, %v296
    %v373 = vpack.c.b16 %v299, %v298
    %v374 = vpack.c.b16 %v301, %v300
    %v375 = vpack.c.b16 %v303, %v302
    %v376 = vpack.c.b16 %v305, %v304
    %v377 = vpack.c.b16 %v307, %v306
    %v378 = vpack.c.b16 %v309, %v308
    %v379 = vpack.c.b16 %v311, %v310
    %v380 = vpack.c.b16 %v313, %v312
    %v381 = vpack.c.b16 %v315, %v314
    %v382 = vpack.c.b16 %v317, %v316
    %v383 = vpack.c.b16 %v319, %v318
    %v384 = vpack.c.b16 %v321, %v320
    %v385 = vpack.c.b16 %v323, %v322
    %v386 = vpack.c.b16 %v325, %v324
    %v387 = vpack.c.b16 %v327, %v326
    %v388 = vpack.c.b16 %v329, %v328
    %v389 = vpack.c.b16 %v331, %v330
    %v390 = vpack.c.b16 %v333, %v332
    %v391 = vpack.c.b16 %v335, %v334
    %v392 = vpack.c.b16 %v337, %v336
    %v393 = vpack.c.b16 %v339, %v338
    %v394 = vpack.c.b16 %v341, %v340
    %v395 = vpack.c.b16 %v343, %v342
    %v396 = vpack.c.b16 %v345, %v344
    %v397 = vpack.c.b16 %v347, %v346
    %v398 = vpack.c.b16 %v349, %v348
    %v399 = vpack.c.b16 %v351, %v350
    %448 = vmatpush.bf16.msra.mxu0 %v359
    %449 = vmatpush.bf16.msra.mxu0 %v358
    %450 = vmatpush.bf16.msra.mxu0 %v357
    %451 = vmatpush.bf16.msra.mxu0 %v356
    %452 = vmatpush.bf16.msra.mxu0 %v355
    %453 = vmatpush.bf16.msra.mxu0 %v354
    %454 = vmatpush.bf16.msra.mxu0 %v353
    %455 = vmatpush.bf16.msra.mxu0 %v352
    %456 = vmatmul.bf16.gmra.mxu0 %v148
    %v457 = vpop.f32.mrf.mxu0
    %v458 = vadd.f32 %v144, %v457
    %v459 = vpop.f32.mrf.mxu0
    %460 = vdwg.mxu0
    %461 = vmatpush.bf16.msra.mxu0 %v367
    %462 = vmatpush.bf16.msra.mxu0 %v366
    %463 = vmatpush.bf16.msra.mxu0 %v365
    %464 = vmatpush.bf16.msra.mxu0 %v364
    %465 = vmatpush.bf16.msra.mxu0 %v363
    %466 = vmatpush.bf16.msra.mxu0 %v362
    %467 = vmatpush.bf16.msra.mxu0 %v361
    %468 = vmatpush.bf16.msra.mxu0 %v360
    %469 = vmatmul.bf16.gmra.mxu0 %v149
    %v470 = vpop.f32.mrf.mxu0
    %v471 = vadd.f32 %v458, %v470
    %v472 = vpop.f32.mrf.mxu0
    %473 = vdwg.mxu0
    %474 = vmatpush.bf16.msra.mxu0 %v375
    %475 = vmatpush.bf16.msra.mxu0 %v374
    %476 = vmatpush.bf16.msra.mxu0 %v373
    %477 = vmatpush.bf16.msra.mxu0 %v372
    %478 = vmatpush.bf16.msra.mxu0 %v371
    %479 = vmatpush.bf16.msra.mxu0 %v370
    %480 = vmatpush.bf16.msra.mxu0 %v369
    %481 = vmatpush.bf16.msra.mxu0 %v368
    %482 = vmatmul.bf16.gmra.mxu0 %v150
    %v483 = vpop.f32.mrf.mxu0
    %v484 = vadd.f32 %v471, %v483
    %v485 = vpop.f32.mrf.mxu0
    %486 = vdwg.mxu0
    %487 = vmatpush.bf16.msra.mxu0 %v383
    %488 = vmatpush.bf16.msra.mxu0 %v382
    %489 = vmatpush.bf16.msra.mxu0 %v381
    %490 = vmatpush.bf16.msra.mxu0 %v380
    %491 = vmatpush.bf16.msra.mxu0 %v379
    %492 = vmatpush.bf16.msra.mxu0 %v378
    %493 = vmatpush.bf16.msra.mxu0 %v377
    %494 = vmatpush.bf16.msra.mxu0 %v376
    %495 = vmatmul.bf16.gmra.mxu0 %v151
    %v496 = vpop.f32.mrf.mxu0
    %v497 = vadd.f32 %v484, %v496
    %v498 = vpop.f32.mrf.mxu0
    %499 = vdwg.mxu0
    %500 = vmatpush.bf16.msra.mxu0 %v391
    %501 = vmatpush.bf16.msra.mxu0 %v390
    %502 = vmatpush.bf16.msra.mxu0 %v389
    %503 = vmatpush.bf16.msra.mxu0 %v388
    %504 = vmatpush.bf16.msra.mxu0 %v387
    %505 = vmatpush.bf16.msra.mxu0 %v386
    %506 = vmatpush.bf16.msra.mxu0 %v385
    %507 = vmatpush.bf16.msra.mxu0 %v384
    %508 = vmatmul.bf16.gmra.mxu0 %v152
    %v509 = vpop.f32.mrf.mxu0
    %v510 = vadd.f32 %v497, %v509
    %v511 = vpop.f32.mrf.mxu0
    %512 = vdwg.mxu0
    %513 = vmatpush.bf16.msra.mxu0 %v399
    %514 = vmatpush.bf16.msra.mxu0 %v398
    %515 = vmatpush.bf16.msra.mxu0 %v397
    %516 = vmatpush.bf16.msra.mxu0 %v396
    %517 = vmatpush.bf16.msra.mxu0 %v395
    %518 = vmatpush.bf16.msra.mxu0 %v394
    %519 = vmatpush.bf16.msra.mxu0 %v393
    %520 = vmatpush.bf16.msra.mxu0 %v392
    %521 = vmatmul.bf16.gmra.mxu0 %v153
    %v522 = vpop.f32.mrf.mxu0
    %v523 = vadd.f32 %v510, %v522
    %v524 = vpop.f32.mrf.mxu0
    %525 = vdwg.mxu0
    %v526 = vpack.c.bf16 %v523, %v523
    %527 = vst [vmem:[#allocation7] sm:$0x1] %v526
    // Predicated region
    $region22: #{tpu_custom_call.1} parent=1 // pred_check
      _
    $region23: #{tpu_custom_call.1} parent=1 // pred_check_branch
      %529 = sbr.rel (0) target = $region25
    $region24: #{tpu_custom_call.1} parent=1 // pred_region
      %531 = vsyncadd [#allocation4], 0
      %s533 = sshll.u32 [#allocation7], 4
      %s534 = int_to_ptr.vmem [resolvable:$true] %s533
      %s535 = sshll.u32 %s3, 4
      %s536 = int_to_ptr.hbm [resolvable:$true] %s535
      %538 = dma.vmem_to_hbm [thread:$0]  %s534, 16, %s536, [#allocation4]
    $region25: #{tpu_custom_call.1} parent=1 // pred_fallthru
      _
    // Predicated region
    $region26: #{tpu_custom_call.1} parent=1 // pred_check
      _
    $region27: #{tpu_custom_call.1} parent=1 // pred_check_branch
      %540 = sbr.rel (0) target = $region29
    $region28: #{tpu_custom_call.1} parent=1 // pred_region
      %542 = dma.done [#allocation4], 16
    $region29: #{tpu_custom_call.1} parent=1 // pred_fallthru
      _
    %543 = vsyncpa [#allocation3], 1
    %544 = vsyncpa [#allocation6], 1
    %545 = vsyncpa [#allocation4], 1

</llo_original>
